<compile_context>
chip_gen: v7x
topology: tpu7x:2x2x1
jax: 0.10.0
libtpu: 0.0.40
codegen_flags: <defaults>
</compile_context>

<pallas_src>
import jax
import jax.numpy as jnp
from jax.experimental import pallas as pl
from jax.experimental.pallas import tpu as pltpu

EPS = 1e-5


def cat_bn_kernel(a_ref, b_ref, ga_ref, ba_ref, gb_ref, bb_ref, out_ref):
    # a_ref: (C1, M) f32, b_ref: (C2, M) f32
    # ga/ba: (C1, 1) f32, gb/bb: (C2, 1) f32
    # out_ref: (C1+C2, M) f32   (channel-major; concat is just the write layout)
    c1 = a_ref.shape[0]
    inv_m = 1.0 / a_ref.shape[1]

    def bn_block(x, gamma, beta):
        # Per-channel (sublane) stats; reduction along the lane axis.
        mean = jnp.sum(x, axis=-1, keepdims=True) * inv_m
        ex2 = jnp.sum(x * x, axis=-1, keepdims=True) * inv_m
        var = ex2 - mean * mean                      # biased var (training mode)
        scale = gamma * jax.lax.rsqrt(var + EPS)     # rsqrt -> EUP slot, ~free
        bias = beta - mean * scale
        return x * scale + bias                      # single FMA per element

    a = a_ref[...].astype(jnp.float32)
    b = b_ref[...].astype(jnp.float32)
    # c1 = 256 is 8-aligned, so these sublane slices are unmasked.
    out_ref[:c1, :] = bn_block(a, ga_ref[...], ba_ref[...]).astype(out_ref.dtype)
    out_ref[c1:, :] = bn_block(b, gb_ref[...], bb_ref[...]).astype(out_ref.dtype)


def cat_batchnorm(x140, x147, gamma, beta):
    """x140: (N, C1, H, W), x147: (N, C2, H, W) in NCHW (PyTorch convention)."""
    N, C1, H, W = x140.shape
    C2 = x147.shape[1]
    C = C1 + C2
    M = N * H * W

    # NCHW -> (C, N*H*W).  For N == 1 this is a free reshape (no data movement);
    # for N > 1 fall back to an explicit transpose to keep semantics correct.
    if N == 1:
        a2d = x140.reshape(C1, M)
        b2d = x147.reshape(C2, M)
    else:
        a2d = jnp.transpose(x140, (1, 0, 2, 3)).reshape(C1, M)
        b2d = jnp.transpose(x147, (1, 0, 2, 3)).reshape(C2, M)

    ga = gamma[:C1].reshape(C1, 1)
    gb = gamma[C1:].reshape(C2, 1)
    ba = beta[:C1].reshape(C1, 1)
    bb = beta[C1:].reshape(C2, 1)

    vmem = pl.BlockSpec(memory_space=pltpu.MemorySpace.VMEM)
    out2d = pl.pallas_call(
        cat_bn_kernel,
        out_shape=jax.ShapeDtypeStruct((C, M), jnp.float32),
        in_specs=[vmem, vmem, vmem, vmem, vmem, vmem],
        out_specs=vmem,
    )(a2d, b2d, ga, ba, gb, bb)

    # (C, N*H*W) -> NCHW.  For N == 1 this is again a free reshape.
    if N == 1:
        return out2d.reshape(1, C, H, W)
    return jnp.transpose(out2d.reshape(C, N, H, W), (1, 0, 2, 3))


# TODO(synk): training-mode BatchNorm2d also updates running_mean/running_var
# (unbiased var, momentum=0.1); not emitted since the module's forward output
# does not use them.


if __name__ == "__main__":
    key = jax.random.PRNGKey(0)
    k1, k2, k3, k4 = jax.random.split(key, 4)

    # Shapes from the module: (1, 256, 14, 14) and (1, 32, 14, 14)
    x140 = jax.random.normal(k1, (1, 256, 14, 14), dtype=jnp.float32)
    x147 = jax.random.normal(k2, (1, 32, 14, 14), dtype=jnp.float32)

    # BatchNorm2d(288) affine parameters (PyTorch default is gamma=1, beta=0;
    # small deterministic perturbation to exercise the affine path).
    gamma = 1.0 + 0.1 * jax.random.normal(k3, (288,), dtype=jnp.float32)
    beta = 0.1 * jax.random.normal(k4, (288,), dtype=jnp.float32)

    out = cat_batchnorm(x140, x147, gamma, beta)
    jax.block_until_ready(out)

    # Pure-JAX reference: training-mode BN on the channel concat.
    x = jnp.concatenate([x140, x147], axis=1)
    mean = jnp.mean(x, axis=(0, 2, 3), keepdims=True)
    var = jnp.mean((x - mean) ** 2, axis=(0, 2, 3), keepdims=True)
    ref = (x - mean) / jnp.sqrt(var + EPS) * gamma[None, :, None, None] + beta[None, :, None, None]
    assert out.shape == (1, 288, 14, 14)
    assert jnp.max(jnp.abs(out - ref)) < 1e-4

    print("KERNEL_OK")
</pallas_src>

<mosaic_0001>
module attributes {stable_mosaic.version = 11 : i64} {
  func.func @cat_bn_kernel(%arg0: memref<256x196xf32, #tpu.memory_space<vmem>>, %arg1: memref<32x196xf32, #tpu.memory_space<vmem>>, %arg2: memref<256x1xf32, #tpu.memory_space<vmem>>, %arg3: memref<256x1xf32, #tpu.memory_space<vmem>>, %arg4: memref<32x1xf32, #tpu.memory_space<vmem>>, %arg5: memref<32x1xf32, #tpu.memory_space<vmem>>, %arg6: memref<288x196xf32, #tpu.memory_space<vmem>>) attributes {dimension_semantics = [], scalar_prefetch = 0 : i64, scratch_operands = 0 : i64, tpu.core_type = #tpu.core_type<tc>} {
    %c0 = arith.constant 0 : index
    %c0_0 = arith.constant 0 : index
    %0 = vector.load %arg0[%c0, %c0_0] : memref<256x196xf32, #tpu.memory_space<vmem>>, vector<256x196xf32>
    %c0_1 = arith.constant 0 : index
    %c0_2 = arith.constant 0 : index
    %1 = vector.load %arg1[%c0_1, %c0_2] : memref<32x196xf32, #tpu.memory_space<vmem>>, vector<32x196xf32>
    %c0_3 = arith.constant 0 : index
    %c0_4 = arith.constant 0 : index
    %2 = vector.load %arg2[%c0_3, %c0_4] : memref<256x1xf32, #tpu.memory_space<vmem>>, vector<256x1xf32>
    %c0_5 = arith.constant 0 : index
    %c0_6 = arith.constant 0 : index
    %3 = vector.load %arg3[%c0_5, %c0_6] : memref<256x1xf32, #tpu.memory_space<vmem>>, vector<256x1xf32>
    %cst = arith.constant dense<0.000000e+00> : vector<256xf32>
    %4 = vector.multi_reduction <add>, %0, %cst [1] : vector<256x196xf32> to vector<256xf32>
    %5 = vector.shape_cast %4 : vector<256xf32> to vector<256x1xf32>
    %cst_7 = arith.constant 0.00510204071 : f32
    %6 = vector.broadcast %cst_7 : f32 to vector<256x1xf32>
    %7 = arith.mulf %5, %6 : vector<256x1xf32>
    %8 = arith.mulf %0, %0 : vector<256x196xf32>
    %cst_8 = arith.constant dense<0.000000e+00> : vector<256xf32>
    %9 = vector.multi_reduction <add>, %8, %cst_8 [1] : vector<256x196xf32> to vector<256xf32>
    %10 = vector.shape_cast %9 : vector<256xf32> to vector<256x1xf32>
    %cst_9 = arith.constant 0.00510204071 : f32
    %11 = vector.broadcast %cst_9 : f32 to vector<256x1xf32>
    %12 = arith.mulf %10, %11 : vector<256x1xf32>
    %13 = arith.mulf %7, %7 : vector<256x1xf32>
    %14 = arith.subf %12, %13 : vector<256x1xf32>
    %cst_10 = arith.constant 9.99999974E-6 : f32
    %15 = vector.broadcast %cst_10 : f32 to vector<256x1xf32>
    %16 = arith.addf %14, %15 : vector<256x1xf32>
    %17 = math.rsqrt %16 : vector<256x1xf32>
    %18 = arith.mulf %2, %17 : vector<256x1xf32>
    %19 = arith.mulf %7, %18 : vector<256x1xf32>
    %20 = arith.subf %3, %19 : vector<256x1xf32>
    %21 = vector.broadcast %18 : vector<256x1xf32> to vector<256x196xf32>
    %22 = arith.mulf %0, %21 : vector<256x196xf32>
    %23 = vector.broadcast %20 : vector<256x1xf32> to vector<256x196xf32>
    %24 = arith.addf %22, %23 : vector<256x196xf32>
    %c0_11 = arith.constant 0 : index
    %c0_12 = arith.constant 0 : index
    %25 = vector.load %arg6[%c0_11, %c0_12] : memref<288x196xf32, #tpu.memory_space<vmem>>, vector<256x196xf32>
    tpu.vector_store %arg6[%c0_11, %c0_12], %24 {strides = array<i32>} : memref<288x196xf32, #tpu.memory_space<vmem>>, vector<256x196xf32>,
    %c0_13 = arith.constant 0 : index
    %c0_14 = arith.constant 0 : index
    %26 = vector.load %arg4[%c0_13, %c0_14] : memref<32x1xf32, #tpu.memory_space<vmem>>, vector<32x1xf32>
    %c0_15 = arith.constant 0 : index
    %c0_16 = arith.constant 0 : index
    %27 = vector.load %arg5[%c0_15, %c0_16] : memref<32x1xf32, #tpu.memory_space<vmem>>, vector<32x1xf32>
    %cst_17 = arith.constant dense<0.000000e+00> : vector<32xf32>
    %28 = vector.multi_reduction <add>, %1, %cst_17 [1] : vector<32x196xf32> to vector<32xf32>
    %29 = vector.shape_cast %28 : vector<32xf32> to vector<32x1xf32>
    %cst_18 = arith.constant 0.00510204071 : f32
    %30 = vector.broadcast %cst_18 : f32 to vector<32x1xf32>
    %31 = arith.mulf %29, %30 : vector<32x1xf32>
    %32 = arith.mulf %1, %1 : vector<32x196xf32>
    %cst_19 = arith.constant dense<0.000000e+00> : vector<32xf32>
    %33 = vector.multi_reduction <add>, %32, %cst_19 [1] : vector<32x196xf32> to vector<32xf32>
    %34 = vector.shape_cast %33 : vector<32xf32> to vector<32x1xf32>
    %cst_20 = arith.constant 0.00510204071 : f32
    %35 = vector.broadcast %cst_20 : f32 to vector<32x1xf32>
    %36 = arith.mulf %34, %35 : vector<32x1xf32>
    %37 = arith.mulf %31, %31 : vector<32x1xf32>
    %38 = arith.subf %36, %37 : vector<32x1xf32>
    %cst_21 = arith.constant 9.99999974E-6 : f32
    %39 = vector.broadcast %cst_21 : f32 to vector<32x1xf32>
    %40 = arith.addf %38, %39 : vector<32x1xf32>
    %41 = math.rsqrt %40 : vector<32x1xf32>
    %42 = arith.mulf %26, %41 : vector<32x1xf32>
    %43 = arith.mulf %31, %42 : vector<32x1xf32>
    %44 = arith.subf %27, %43 : vector<32x1xf32>
    %45 = vector.broadcast %42 : vector<32x1xf32> to vector<32x196xf32>
    %46 = arith.mulf %1, %45 : vector<32x196xf32>
    %47 = vector.broadcast %44 : vector<32x1xf32> to vector<32x196xf32>
    %48 = arith.addf %46, %47 : vector<32x196xf32>
    %c256 = arith.constant 256 : index
    %c0_22 = arith.constant 0 : index
    %49 = vector.load %arg6[%c256, %c0_22] : memref<288x196xf32, #tpu.memory_space<vmem>>, vector<32x196xf32>
    tpu.vector_store %arg6[%c256, %c0_22], %48 {strides = array<i32>} : memref<288x196xf32, #tpu.memory_space<vmem>>, vector<32x196xf32>,
    return
  }
}

</mosaic_0001>

<llo_original>
// kernel: tpu_custom_call.1
$region0: #{tpu_custom_call.1}
  #allocation0 [shape = 'u32[]', space=smem, size = 0x4, offset = 0x4, fixed_abs, tag = 'smem constant byte address 0x4 - core index']
  #allocation1 [shape = 'u32[144,128]{1,0:T(1,128)}', space=vmem, size = 0x12000, scoped, tag = 'internal scratch']
  %s0 = inlined_call_operand.vmem [shape: f32[256,196], index: 0, kind: input, shape index: {}]
  %s1 = inlined_call_operand.vmem [shape: f32[32,196], index: 1, kind: input, shape index: {}]
  %s2 = inlined_call_operand.vmem [shape: f32[256,1], index: 2, kind: input, shape index: {}]
  %s3 = inlined_call_operand.vmem [shape: f32[256,1], index: 3, kind: input, shape index: {}]
  %s4 = inlined_call_operand.vmem [shape: f32[32,1], index: 4, kind: input, shape index: {}]
  %s5 = inlined_call_operand.vmem [shape: f32[32,1], index: 5, kind: input, shape index: {}]
  %s6 = inlined_call_operand.hbm [shape: f32[288,196], index: 6, kind: output, shape index: {}]
  %s7 = sld [smem:[#allocation0]]
  $region34: #{tpu_custom_call.1} parent=0
    _
  %s9 = ssub.s32 1, %s7
  %s10 = scalar_select 0, %s9, %s7
  $region1: #{tpu_custom_call.1} parent=0
    #allocation2 [shape = 'u8[294912]{0}', space=vmem, size = 0x48000, scoped, tag = 'output window, operand 0, single buffered']
    #allocation3 [shape = 's32[1]{0}', space=sflag, size = 0x4, scoped, tag = 'scoped memory for tpu_custom_call.1']
    %11 = vsyncpa [#allocation3], 0
    // Predicated region
    $region2: #{tpu_custom_call.1} parent=1 // pred_check
      _
    $region3: #{tpu_custom_call.1} parent=1 // pred_check_branch
      %13 = sbr.rel (0) target = $region5
    $region4: #{tpu_custom_call.1} parent=1 // pred_region
      _
    $region5: #{tpu_custom_call.1} parent=1 // pred_fallthru
      _
    // Predicated region
    $region6: #{tpu_custom_call.1} parent=1 // pred_check
      _
    $region7: #{tpu_custom_call.1} parent=1 // pred_check_branch
      %15 = sbr.rel (0) target = $region9
    $region8: #{tpu_custom_call.1} parent=1 // pred_region
      _
    $region9: #{tpu_custom_call.1} parent=1 // pred_fallthru
      _
    // Predicated region
    $region10: #{tpu_custom_call.1} parent=1 // pred_check
      _
    $region11: #{tpu_custom_call.1} parent=1 // pred_check_branch
      %17 = sbr.rel (0) target = $region13
    $region12: #{tpu_custom_call.1} parent=1 // pred_region
      _
    $region13: #{tpu_custom_call.1} parent=1 // pred_fallthru
      _
    // Predicated region
    $region14: #{tpu_custom_call.1} parent=1 // pred_check
      _
    $region15: #{tpu_custom_call.1} parent=1 // pred_check_branch
      %19 = sbr.rel (0) target = $region17
    $region16: #{tpu_custom_call.1} parent=1 // pred_region
      _
    $region17: #{tpu_custom_call.1} parent=1 // pred_fallthru
      _
    // Predicated region
    $region18: #{tpu_custom_call.1} parent=1 // pred_check
      _
    $region19: #{tpu_custom_call.1} parent=1 // pred_check_branch
      %21 = sbr.rel (0) target = $region21
    $region20: #{tpu_custom_call.1} parent=1 // pred_region
      _
    $region21: #{tpu_custom_call.1} parent=1 // pred_fallthru
      _
    // Predicated region
    $region22: #{tpu_custom_call.1} parent=1 // pred_check
      _
    $region23: #{tpu_custom_call.1} parent=1 // pred_check_branch
      %23 = sbr.rel (0) target = $region25
    $region24: #{tpu_custom_call.1} parent=1 // pred_region
      _
    $region25: #{tpu_custom_call.1} parent=1 // pred_fallthru
      _
    %v24 = vld [vmem:[%s0] sm:$0xff]
    %v25 = vld [vmem:[%s0 + $0x8] sm:$0xff]
    %v26 = vld [vmem:[%s0 + $0x10] sm:$0xff]
    %v27 = vld [vmem:[%s0 + $0x18] sm:$0xff]
    %v28 = vld [vmem:[%s0 + $0x20] sm:$0xff]
    %v29 = vld [vmem:[%s0 + $0x28] sm:$0xff]
    %v30 = vld [vmem:[%s0 + $0x30] sm:$0xff]
    %v31 = vld [vmem:[%s0 + $0x38] sm:$0xff]
    %v32 = vld [vmem:[%s0 + $0x40] sm:$0xff]
    %v33 = vld [vmem:[%s0 + $0x48] sm:$0xff]
    %v34 = vld [vmem:[%s0 + $0x50] sm:$0xff]
    %v35 = vld [vmem:[%s0 + $0x58] sm:$0xff]
    %v36 = vld [vmem:[%s0 + $0x60] sm:$0xff]
    %v37 = vld [vmem:[%s0 + $0x68] sm:$0xff]
    %v38 = vld [vmem:[%s0 + $0x70] sm:$0xff]
    %v39 = vld [vmem:[%s0 + $0x78] sm:$0xff]
    %v40 = vld [vmem:[%s0 + $0x80] sm:$0xff]
    %v41 = vld [vmem:[%s0 + $0x88] sm:$0xff]
    %v42 = vld [vmem:[%s0 + $0x90] sm:$0xff]
    %v43 = vld [vmem:[%s0 + $0x98] sm:$0xff]
    %v44 = vld [vmem:[%s0 + $0xa0] sm:$0xff]
    %v45 = vld [vmem:[%s0 + $0xa8] sm:$0xff]
    %v46 = vld [vmem:[%s0 + $0xb0] sm:$0xff]
    %v47 = vld [vmem:[%s0 + $0xb8] sm:$0xff]
    %v48 = vld [vmem:[%s0 + $0xc0] sm:$0xff]
    %v49 = vld [vmem:[%s0 + $0xc8] sm:$0xff]
    %v50 = vld [vmem:[%s0 + $0xd0] sm:$0xff]
    %v51 = vld [vmem:[%s0 + $0xd8] sm:$0xff]
    %v52 = vld [vmem:[%s0 + $0xe0] sm:$0xff]
    %v53 = vld [vmem:[%s0 + $0xe8] sm:$0xff]
    %v54 = vld [vmem:[%s0 + $0xf0] sm:$0xff]
    %v55 = vld [vmem:[%s0 + $0xf8] sm:$0xff]
    %v56 = vld [vmem:[%s0 + $0x100] sm:$0xff]
    %v57 = vld [vmem:[%s0 + $0x108] sm:$0xff]
    %v58 = vld [vmem:[%s0 + $0x110] sm:$0xff]
    %v59 = vld [vmem:[%s0 + $0x118] sm:$0xff]
    %v60 = vld [vmem:[%s0 + $0x120] sm:$0xff]
    %v61 = vld [vmem:[%s0 + $0x128] sm:$0xff]
    %v62 = vld [vmem:[%s0 + $0x130] sm:$0xff]
    %v63 = vld [vmem:[%s0 + $0x138] sm:$0xff]
    %v64 = vld [vmem:[%s0 + $0x140] sm:$0xff]
    %v65 = vld [vmem:[%s0 + $0x148] sm:$0xff]
    %v66 = vld [vmem:[%s0 + $0x150] sm:$0xff]
    %v67 = vld [vmem:[%s0 + $0x158] sm:$0xff]
    %v68 = vld [vmem:[%s0 + $0x160] sm:$0xff]
    %v69 = vld [vmem:[%s0 + $0x168] sm:$0xff]
    %v70 = vld [vmem:[%s0 + $0x170] sm:$0xff]
    %v71 = vld [vmem:[%s0 + $0x178] sm:$0xff]
    %v72 = vld [vmem:[%s0 + $0x180] sm:$0xff]
    %v73 = vld [vmem:[%s0 + $0x188] sm:$0xff]
    %v74 = vld [vmem:[%s0 + $0x190] sm:$0xff]
    %v75 = vld [vmem:[%s0 + $0x198] sm:$0xff]
    %v76 = vld [vmem:[%s0 + $0x1a0] sm:$0xff]
    %v77 = vld [vmem:[%s0 + $0x1a8] sm:$0xff]
    %v78 = vld [vmem:[%s0 + $0x1b0] sm:$0xff]
    %v79 = vld [vmem:[%s0 + $0x1b8] sm:$0xff]
    %v80 = vld [vmem:[%s0 + $0x1c0] sm:$0xff]
    %v81 = vld [vmem:[%s0 + $0x1c8] sm:$0xff]
    %v82 = vld [vmem:[%s0 + $0x1d0] sm:$0xff]
    %v83 = vld [vmem:[%s0 + $0x1d8] sm:$0xff]
    %v84 = vld [vmem:[%s0 + $0x1e0] sm:$0xff]
    %v85 = vld [vmem:[%s0 + $0x1e8] sm:$0xff]
    %v86 = vld [vmem:[%s0 + $0x1f0] sm:$0xff]
    %v87 = vld [vmem:[%s0 + $0x1f8] sm:$0xff]
    %v88 = vld [vmem:[%s1] sm:$0xff]
    %v89 = vld [vmem:[%s1 + $0x8] sm:$0xff]
    %v90 = vld [vmem:[%s1 + $0x10] sm:$0xff]
    %v91 = vld [vmem:[%s1 + $0x18] sm:$0xff]
    %v92 = vld [vmem:[%s1 + $0x20] sm:$0xff]
    %v93 = vld [vmem:[%s1 + $0x28] sm:$0xff]
    %v94 = vld [vmem:[%s1 + $0x30] sm:$0xff]
    %v95 = vld [vmem:[%s1 + $0x38] sm:$0xff]
    %v96 = vld [vmem:[%s2] sm:$0xff]
    %v97 = vld [vmem:[%s2 + $0x8] sm:$0xff]
    %v98 = vld [vmem:[%s2 + $0x10] sm:$0xff]
    %v99 = vld [vmem:[%s2 + $0x18] sm:$0xff]
    %v100 = vld [vmem:[%s2 + $0x20] sm:$0xff]
    %v101 = vld [vmem:[%s2 + $0x28] sm:$0xff]
    %v102 = vld [vmem:[%s2 + $0x30] sm:$0xff]
    %v103 = vld [vmem:[%s2 + $0x38] sm:$0xff]
    %v104 = vld [vmem:[%s2 + $0x40] sm:$0xff]
    %v105 = vld [vmem:[%s2 + $0x48] sm:$0xff]
    %v106 = vld [vmem:[%s2 + $0x50] sm:$0xff]
    %v107 = vld [vmem:[%s2 + $0x58] sm:$0xff]
    %v108 = vld [vmem:[%s2 + $0x60] sm:$0xff]
    %v109 = vld [vmem:[%s2 + $0x68] sm:$0xff]
    %v110 = vld [vmem:[%s2 + $0x70] sm:$0xff]
    %v111 = vld [vmem:[%s2 + $0x78] sm:$0xff]
    %v112 = vld [vmem:[%s2 + $0x80] sm:$0xff]
    %v113 = vld [vmem:[%s2 + $0x88] sm:$0xff]
    %v114 = vld [vmem:[%s2 + $0x90] sm:$0xff]
    %v115 = vld [vmem:[%s2 + $0x98] sm:$0xff]
    %v116 = vld [vmem:[%s2 + $0xa0] sm:$0xff]
    %v117 = vld [vmem:[%s2 + $0xa8] sm:$0xff]
    %v118 = vld [vmem:[%s2 + $0xb0] sm:$0xff]
    %v119 = vld [vmem:[%s2 + $0xb8] sm:$0xff]
    %v120 = vld [vmem:[%s2 + $0xc0] sm:$0xff]
    %v121 = vld [vmem:[%s2 + $0xc8] sm:$0xff]
    %v122 = vld [vmem:[%s2 + $0xd0] sm:$0xff]
    %v123 = vld [vmem:[%s2 + $0xd8] sm:$0xff]
    %v124 = vld [vmem:[%s2 + $0xe0] sm:$0xff]
    %v125 = vld [vmem:[%s2 + $0xe8] sm:$0xff]
    %v126 = vld [vmem:[%s2 + $0xf0] sm:$0xff]
    %v127 = vld [vmem:[%s2 + $0xf8] sm:$0xff]
    %v128 = vld [vmem:[%s3] sm:$0xff]
    %v129 = vld [vmem:[%s3 + $0x8] sm:$0xff]
    %v130 = vld [vmem:[%s3 + $0x10] sm:$0xff]
    %v131 = vld [vmem:[%s3 + $0x18] sm:$0xff]
    %v132 = vld [vmem:[%s3 + $0x20] sm:$0xff]
    %v133 = vld [vmem:[%s3 + $0x28] sm:$0xff]
    %v134 = vld [vmem:[%s3 + $0x30] sm:$0xff]
    %v135 = vld [vmem:[%s3 + $0x38] sm:$0xff]
    %v136 = vld [vmem:[%s3 + $0x40] sm:$0xff]
    %v137 = vld [vmem:[%s3 + $0x48] sm:$0xff]
    %v138 = vld [vmem:[%s3 + $0x50] sm:$0xff]
    %v139 = vld [vmem:[%s3 + $0x58] sm:$0xff]
    %v140 = vld [vmem:[%s3 + $0x60] sm:$0xff]
    %v141 = vld [vmem:[%s3 + $0x68] sm:$0xff]
    %v142 = vld [vmem:[%s3 + $0x70] sm:$0xff]
    %v143 = vld [vmem:[%s3 + $0x78] sm:$0xff]
    %v144 = vld [vmem:[%s3 + $0x80] sm:$0xff]
    %v145 = vld [vmem:[%s3 + $0x88] sm:$0xff]
    %v146 = vld [vmem:[%s3 + $0x90] sm:$0xff]
    %v147 = vld [vmem:[%s3 + $0x98] sm:$0xff]
    %v148 = vld [vmem:[%s3 + $0xa0] sm:$0xff]
    %v149 = vld [vmem:[%s3 + $0xa8] sm:$0xff]
    %v150 = vld [vmem:[%s3 + $0xb0] sm:$0xff]
    %v151 = vld [vmem:[%s3 + $0xb8] sm:$0xff]
    %v152 = vld [vmem:[%s3 + $0xc0] sm:$0xff]
    %v153 = vld [vmem:[%s3 + $0xc8] sm:$0xff]
    %v154 = vld [vmem:[%s3 + $0xd0] sm:$0xff]
    %v155 = vld [vmem:[%s3 + $0xd8] sm:$0xff]
    %v156 = vld [vmem:[%s3 + $0xe0] sm:$0xff]
    %v157 = vld [vmem:[%s3 + $0xe8] sm:$0xff]
    %v158 = vld [vmem:[%s3 + $0xf0] sm:$0xff]
    %v159 = vld [vmem:[%s3 + $0xf8] sm:$0xff]
    %vm160 = vcmask 556032
    %v161 = vsel %vm160, %v25, 0.0
    %v162 = vadd.f32 %v24, %v161
    %163 = vadd.xlane.f32.xlu0 %v162
    %v164 = vpop.xlane.xlu0 %163
    %v165 = vsel %vm160, %v27, 0.0
    %v166 = vadd.f32 %v26, %v165
    %167 = vadd.xlane.f32.xlu0 %v166
    %v168 = vpop.xlane.xlu0 %167
    %v169 = vsel %vm160, %v29, 0.0
    %v170 = vadd.f32 %v28, %v169
    %171 = vadd.xlane.f32.xlu0 %v170
    %v172 = vpop.xlane.xlu0 %171
    %v173 = vsel %vm160, %v31, 0.0
    %v174 = vadd.f32 %v30, %v173
    %175 = vadd.xlane.f32.xlu0 %v174
    %v176 = vpop.xlane.xlu0 %175
    %v177 = vsel %vm160, %v33, 0.0
    %v178 = vadd.f32 %v32, %v177
    %179 = vadd.xlane.f32.xlu0 %v178
    %v180 = vpop.xlane.xlu0 %179
    %v181 = vsel %vm160, %v35, 0.0
    %v182 = vadd.f32 %v34, %v181
    %183 = vadd.xlane.f32.xlu0 %v182
    %v184 = vpop.xlane.xlu0 %183
    %v185 = vsel %vm160, %v37, 0.0
    %v186 = vadd.f32 %v36, %v185
    %187 = vadd.xlane.f32.xlu0 %v186
    %v188 = vpop.xlane.xlu0 %187
    %v189 = vsel %vm160, %v39, 0.0
    %v190 = vadd.f32 %v38, %v189
    %191 = vadd.xlane.f32.xlu0 %v190
    %v192 = vpop.xlane.xlu0 %191
    %v193 = vsel %vm160, %v41, 0.0
    %v194 = vadd.f32 %v40, %v193
    %195 = vadd.xlane.f32.xlu0 %v194
    %v196 = vpop.xlane.xlu0 %195
    %v197 = vsel %vm160, %v43, 0.0
    %v198 = vadd.f32 %v42, %v197
    %199 = vadd.xlane.f32.xlu0 %v198
    %v200 = vpop.xlane.xlu0 %199
    %v201 = vsel %vm160, %v45, 0.0
    %v202 = vadd.f32 %v44, %v201
    %203 = vadd.xlane.f32.xlu0 %v202
    %v204 = vpop.xlane.xlu0 %203
    %v205 = vsel %vm160, %v47, 0.0
    %v206 = vadd.f32 %v46, %v205
    %207 = vadd.xlane.f32.xlu0 %v206
    %v208 = vpop.xlane.xlu0 %207
    %v209 = vsel %vm160, %v49, 0.0
    %v210 = vadd.f32 %v48, %v209
    %211 = vadd.xlane.f32.xlu0 %v210
    %v212 = vpop.xlane.xlu0 %211
    %v213 = vsel %vm160, %v51, 0.0
    %v214 = vadd.f32 %v50, %v213
    %215 = vadd.xlane.f32.xlu0 %v214
    %v216 = vpop.xlane.xlu0 %215
    %v217 = vsel %vm160, %v53, 0.0
    %v218 = vadd.f32 %v52, %v217
    %219 = vadd.xlane.f32.xlu0 %v218
    %v220 = vpop.xlane.xlu0 %219
    %v221 = vsel %vm160, %v55, 0.0
    %v222 = vadd.f32 %v54, %v221
    %223 = vadd.xlane.f32.xlu0 %v222
    %v224 = vpop.xlane.xlu0 %223
    %v225 = vsel %vm160, %v57, 0.0
    %v226 = vadd.f32 %v56, %v225
    %227 = vadd.xlane.f32.xlu0 %v226
    %v228 = vpop.xlane.xlu0 %227
    %v229 = vsel %vm160, %v59, 0.0
    %v230 = vadd.f32 %v58, %v229
    %231 = vadd.xlane.f32.xlu0 %v230
    %v232 = vpop.xlane.xlu0 %231
    %v233 = vsel %vm160, %v61, 0.0
    %v234 = vadd.f32 %v60, %v233
    %235 = vadd.xlane.f32.xlu0 %v234
    %v236 = vpop.xlane.xlu0 %235
    %v237 = vsel %vm160, %v63, 0.0
    %v238 = vadd.f32 %v62, %v237
    %239 = vadd.xlane.f32.xlu0 %v238
    %v240 = vpop.xlane.xlu0 %239
    %v241 = vsel %vm160, %v65, 0.0
    %v242 = vadd.f32 %v64, %v241
    %243 = vadd.xlane.f32.xlu0 %v242
    %v244 = vpop.xlane.xlu0 %243
    %v245 = vsel %vm160, %v67, 0.0
    %v246 = vadd.f32 %v66, %v245
    %247 = vadd.xlane.f32.xlu0 %v246
    %v248 = vpop.xlane.xlu0 %247
    %v249 = vsel %vm160, %v69, 0.0
    %v250 = vadd.f32 %v68, %v249
    %251 = vadd.xlane.f32.xlu0 %v250
    %v252 = vpop.xlane.xlu0 %251
    %v253 = vsel %vm160, %v71, 0.0
    %v254 = vadd.f32 %v70, %v253
    %255 = vadd.xlane.f32.xlu0 %v254
    %v256 = vpop.xlane.xlu0 %255
    %v257 = vsel %vm160, %v73, 0.0
    %v258 = vadd.f32 %v72, %v257
    %259 = vadd.xlane.f32.xlu0 %v258
    %v260 = vpop.xlane.xlu0 %259
    %v261 = vsel %vm160, %v75, 0.0
    %v262 = vadd.f32 %v74, %v261
    %263 = vadd.xlane.f32.xlu0 %v262
    %v264 = vpop.xlane.xlu0 %263
    %v265 = vsel %vm160, %v77, 0.0
    %v266 = vadd.f32 %v76, %v265
    %267 = vadd.xlane.f32.xlu0 %v266
    %v268 = vpop.xlane.xlu0 %267
    %v269 = vsel %vm160, %v79, 0.0
    %v270 = vadd.f32 %v78, %v269
    %271 = vadd.xlane.f32.xlu0 %v270
    %v272 = vpop.xlane.xlu0 %271
    %v273 = vsel %vm160, %v81, 0.0
    %v274 = vadd.f32 %v80, %v273
    %275 = vadd.xlane.f32.xlu0 %v274
    %v276 = vpop.xlane.xlu0 %275
    %v277 = vsel %vm160, %v83, 0.0
    %v278 = vadd.f32 %v82, %v277
    %279 = vadd.xlane.f32.xlu0 %v278
    %v280 = vpop.xlane.xlu0 %279
    %v281 = vsel %vm160, %v85, 0.0
    %v282 = vadd.f32 %v84, %v281
    %283 = vadd.xlane.f32.xlu0 %v282
    %v284 = vpop.xlane.xlu0 %283
    %v285 = vsel %vm160, %v87, 0.0
    %v286 = vadd.f32 %v86, %v285
    %287 = vadd.xlane.f32.xlu0 %v286
    %v288 = vpop.xlane.xlu0 %287
    %v289 = vmul.f32 %v164, 0.0051020407
    %v290 = vmul.f32 %v168, 0.0051020407
    %v291 = vmul.f32 %v172, 0.0051020407
    %v292 = vmul.f32 %v176, 0.0051020407
    %v293 = vmul.f32 %v180, 0.0051020407
    %v294 = vmul.f32 %v184, 0.0051020407
    %v295 = vmul.f32 %v188, 0.0051020407
    %v296 = vmul.f32 %v192, 0.0051020407
    %v297 = vmul.f32 %v196, 0.0051020407
    %v298 = vmul.f32 %v200, 0.0051020407
    %v299 = vmul.f32 %v204, 0.0051020407
    %v300 = vmul.f32 %v208, 0.0051020407
    %v301 = vmul.f32 %v212, 0.0051020407
    %v302 = vmul.f32 %v216, 0.0051020407
    %v303 = vmul.f32 %v220, 0.0051020407
    %v304 = vmul.f32 %v224, 0.0051020407
    %v305 = vmul.f32 %v228, 0.0051020407
    %v306 = vmul.f32 %v232, 0.0051020407
    %v307 = vmul.f32 %v236, 0.0051020407
    %v308 = vmul.f32 %v240, 0.0051020407
    %v309 = vmul.f32 %v244, 0.0051020407
    %v310 = vmul.f32 %v248, 0.0051020407
    %v311 = vmul.f32 %v252, 0.0051020407
    %v312 = vmul.f32 %v256, 0.0051020407
    %v313 = vmul.f32 %v260, 0.0051020407
    %v314 = vmul.f32 %v264, 0.0051020407
    %v315 = vmul.f32 %v268, 0.0051020407
    %v316 = vmul.f32 %v272, 0.0051020407
    %v317 = vmul.f32 %v276, 0.0051020407
    %v318 = vmul.f32 %v280, 0.0051020407
    %v319 = vmul.f32 %v284, 0.0051020407
    %v320 = vmul.f32 %v288, 0.0051020407
    %v321 = vmul.f32 %v24, %v24
    %v322 = vmul.f32 %v25, %v25
    %v323 = vmul.f32 %v26, %v26
    %v324 = vmul.f32 %v27, %v27
    %v325 = vmul.f32 %v28, %v28
    %v326 = vmul.f32 %v29, %v29
    %v327 = vmul.f32 %v30, %v30
    %v328 = vmul.f32 %v31, %v31
    %v329 = vmul.f32 %v32, %v32
    %v330 = vmul.f32 %v33, %v33
    %v331 = vmul.f32 %v34, %v34
    %v332 = vmul.f32 %v35, %v35
    %v333 = vmul.f32 %v36, %v36
    %v334 = vmul.f32 %v37, %v37
    %v335 = vmul.f32 %v38, %v38
    %v336 = vmul.f32 %v39, %v39
    %v337 = vmul.f32 %v40, %v40
    %v338 = vmul.f32 %v41, %v41
    %v339 = vmul.f32 %v42, %v42
    %v340 = vmul.f32 %v43, %v43
    %v341 = vmul.f32 %v44, %v44
    %v342 = vmul.f32 %v45, %v45
    %v343 = vmul.f32 %v46, %v46
    %v344 = vmul.f32 %v47, %v47
    %v345 = vmul.f32 %v48, %v48
    %v346 = vmul.f32 %v49, %v49
    %v347 = vmul.f32 %v50, %v50
    %v348 = vmul.f32 %v51, %v51
    %v349 = vmul.f32 %v52, %v52
    %v350 = vmul.f32 %v53, %v53
    %v351 = vmul.f32 %v54, %v54
    %v352 = vmul.f32 %v55, %v55
    %v353 = vmul.f32 %v56, %v56
    %v354 = vmul.f32 %v57, %v57
    %v355 = vmul.f32 %v58, %v58
    %v356 = vmul.f32 %v59, %v59
    %v357 = vmul.f32 %v60, %v60
    %v358 = vmul.f32 %v61, %v61
    %v359 = vmul.f32 %v62, %v62
    %v360 = vmul.f32 %v63, %v63
    %v361 = vmul.f32 %v64, %v64
    %v362 = vmul.f32 %v65, %v65
    %v363 = vmul.f32 %v66, %v66
    %v364 = vmul.f32 %v67, %v67
    %v365 = vmul.f32 %v68, %v68
    %v366 = vmul.f32 %v69, %v69
    %v367 = vmul.f32 %v70, %v70
    %v368 = vmul.f32 %v71, %v71
    %v369 = vmul.f32 %v72, %v72
    %v370 = vmul.f32 %v73, %v73
    %v371 = vmul.f32 %v74, %v74
    %v372 = vmul.f32 %v75, %v75
    %v373 = vmul.f32 %v76, %v76
    %v374 = vmul.f32 %v77, %v77
    %v375 = vmul.f32 %v78, %v78
    %v376 = vmul.f32 %v79, %v79
    %v377 = vmul.f32 %v80, %v80
    %v378 = vmul.f32 %v81, %v81
    %v379 = vmul.f32 %v82, %v82
    %v380 = vmul.f32 %v83, %v83
    %v381 = vmul.f32 %v84, %v84
    %v382 = vmul.f32 %v85, %v85
    %v383 = vmul.f32 %v86, %v86
    %v384 = vmul.f32 %v87, %v87
    %v385 = vsel %vm160, %v322, 0.0
    %v386 = vadd.f32 %v321, %v385
    %387 = vadd.xlane.f32.xlu0 %v386
    %v388 = vpop.xlane.xlu0 %387
    %v389 = vsel %vm160, %v324, 0.0
    %v390 = vadd.f32 %v323, %v389
    %391 = vadd.xlane.f32.xlu0 %v390
    %v392 = vpop.xlane.xlu0 %391
    %v393 = vsel %vm160, %v326, 0.0
    %v394 = vadd.f32 %v325, %v393
    %395 = vadd.xlane.f32.xlu0 %v394
    %v396 = vpop.xlane.xlu0 %395
    %v397 = vsel %vm160, %v328, 0.0
    %v398 = vadd.f32 %v327, %v397
    %399 = vadd.xlane.f32.xlu0 %v398
    %v400 = vpop.xlane.xlu0 %399
    %v401 = vsel %vm160, %v330, 0.0
    %v402 = vadd.f32 %v329, %v401
    %403 = vadd.xlane.f32.xlu0 %v402
    %v404 = vpop.xlane.xlu0 %403
    %v405 = vsel %vm160, %v332, 0.0
    %v406 = vadd.f32 %v331, %v405
    %407 = vadd.xlane.f32.xlu0 %v406
    %v408 = vpop.xlane.xlu0 %407
    %v409 = vsel %vm160, %v334, 0.0
    %v410 = vadd.f32 %v333, %v409
    %411 = vadd.xlane.f32.xlu0 %v410
    %v412 = vpop.xlane.xlu0 %411
    %v413 = vsel %vm160, %v336, 0.0
    %v414 = vadd.f32 %v335, %v413
    %415 = vadd.xlane.f32.xlu0 %v414
    %v416 = vpop.xlane.xlu0 %415
    %v417 = vsel %vm160, %v338, 0.0
    %v418 = vadd.f32 %v337, %v417
    %419 = vadd.xlane.f32.xlu0 %v418
    %v420 = vpop.xlane.xlu0 %419
    %v421 = vsel %vm160, %v340, 0.0
    %v422 = vadd.f32 %v339, %v421
    %423 = vadd.xlane.f32.xlu0 %v422
    %v424 = vpop.xlane.xlu0 %423
    %v425 = vsel %vm160, %v342, 0.0
    %v426 = vadd.f32 %v341, %v425
    %427 = vadd.xlane.f32.xlu0 %v426
    %v428 = vpop.xlane.xlu0 %427
    %v429 = vsel %vm160, %v344, 0.0
    %v430 = vadd.f32 %v343, %v429
    %431 = vadd.xlane.f32.xlu0 %v430
    %v432 = vpop.xlane.xlu0 %431
    %v433 = vsel %vm160, %v346, 0.0
    %v434 = vadd.f32 %v345, %v433
    %435 = vadd.xlane.f32.xlu0 %v434
    %v436 = vpop.xlane.xlu0 %435
    %v437 = vsel %vm160, %v348, 0.0
    %v438 = vadd.f32 %v347, %v437
    %439 = vadd.xlane.f32.xlu0 %v438
    %v440 = vpop.xlane.xlu0 %439
    %v441 = vsel %vm160, %v350, 0.0
    %v442 = vadd.f32 %v349, %v441
    %443 = vadd.xlane.f32.xlu0 %v442
    %v444 = vpop.xlane.xlu0 %443
    %v445 = vsel %vm160, %v352, 0.0
    %v446 = vadd.f32 %v351, %v445
    %447 = vadd.xlane.f32.xlu0 %v446
    %v448 = vpop.xlane.xlu0 %447
    %v449 = vsel %vm160, %v354, 0.0
    %v450 = vadd.f32 %v353, %v449
    %451 = vadd.xlane.f32.xlu0 %v450
    %v452 = vpop.xlane.xlu0 %451
    %v453 = vsel %vm160, %v356, 0.0
    %v454 = vadd.f32 %v355, %v453
    %455 = vadd.xlane.f32.xlu0 %v454
    %v456 = vpop.xlane.xlu0 %455
    %v457 = vsel %vm160, %v358, 0.0
    %v458 = vadd.f32 %v357, %v457
    %459 = vadd.xlane.f32.xlu0 %v458
    %v460 = vpop.xlane.xlu0 %459
    %v461 = vsel %vm160, %v360, 0.0
    %v462 = vadd.f32 %v359, %v461
    %463 = vadd.xlane.f32.xlu0 %v462
    %v464 = vpop.xlane.xlu0 %463
    %v465 = vsel %vm160, %v362, 0.0
    %v466 = vadd.f32 %v361, %v465
    %467 = vadd.xlane.f32.xlu0 %v466
    %v468 = vpop.xlane.xlu0 %467
    %v469 = vsel %vm160, %v364, 0.0
    %v470 = vadd.f32 %v363, %v469
    %471 = vadd.xlane.f32.xlu0 %v470
    %v472 = vpop.xlane.xlu0 %471
    %v473 = vsel %vm160, %v366, 0.0
    %v474 = vadd.f32 %v365, %v473
    %475 = vadd.xlane.f32.xlu0 %v474
    %v476 = vpop.xlane.xlu0 %475
    %v477 = vsel %vm160, %v368, 0.0
    %v478 = vadd.f32 %v367, %v477
    %479 = vadd.xlane.f32.xlu0 %v478
    %v480 = vpop.xlane.xlu0 %479
    %v481 = vsel %vm160, %v370, 0.0
    %v482 = vadd.f32 %v369, %v481
    %483 = vadd.xlane.f32.xlu0 %v482
    %v484 = vpop.xlane.xlu0 %483
    %v485 = vsel %vm160, %v372, 0.0
    %v486 = vadd.f32 %v371, %v485
    %487 = vadd.xlane.f32.xlu0 %v486
    %v488 = vpop.xlane.xlu0 %487
    %v489 = vsel %vm160, %v374, 0.0
    %v490 = vadd.f32 %v373, %v489
    %491 = vadd.xlane.f32.xlu0 %v490
    %v492 = vpop.xlane.xlu0 %491
    %v493 = vsel %vm160, %v376, 0.0
    %v494 = vadd.f32 %v375, %v493
    %495 = vadd.xlane.f32.xlu0 %v494
    %v496 = vpop.xlane.xlu0 %495
    %v497 = vsel %vm160, %v378, 0.0
    %v498 = vadd.f32 %v377, %v497
    %499 = vadd.xlane.f32.xlu0 %v498
    %v500 = vpop.xlane.xlu0 %499
    %v501 = vsel %vm160, %v380, 0.0
    %v502 = vadd.f32 %v379, %v501
    %503 = vadd.xlane.f32.xlu0 %v502
    %v504 = vpop.xlane.xlu0 %503
    %v505 = vsel %vm160, %v382, 0.0
    %v506 = vadd.f32 %v381, %v505
    %507 = vadd.xlane.f32.xlu0 %v506
    %v508 = vpop.xlane.xlu0 %507
    %v509 = vsel %vm160, %v384, 0.0
    %v510 = vadd.f32 %v383, %v509
    %511 = vadd.xlane.f32.xlu0 %v510
    %v512 = vpop.xlane.xlu0 %511
    %v513 = vmul.f32 %v388, 0.0051020407
    %v514 = vmul.f32 %v392, 0.0051020407
    %v515 = vmul.f32 %v396, 0.0051020407
    %v516 = vmul.f32 %v400, 0.0051020407
    %v517 = vmul.f32 %v404, 0.0051020407
    %v518 = vmul.f32 %v408, 0.0051020407
    %v519 = vmul.f32 %v412, 0.0051020407
    %v520 = vmul.f32 %v416, 0.0051020407
    %v521 = vmul.f32 %v420, 0.0051020407
    %v522 = vmul.f32 %v424, 0.0051020407
    %v523 = vmul.f32 %v428, 0.0051020407
    %v524 = vmul.f32 %v432, 0.0051020407
    %v525 = vmul.f32 %v436, 0.0051020407
    %v526 = vmul.f32 %v440, 0.0051020407
    %v527 = vmul.f32 %v444, 0.0051020407
    %v528 = vmul.f32 %v448, 0.0051020407
    %v529 = vmul.f32 %v452, 0.0051020407
    %v530 = vmul.f32 %v456, 0.0051020407
    %v531 = vmul.f32 %v460, 0.0051020407
    %v532 = vmul.f32 %v464, 0.0051020407
    %v533 = vmul.f32 %v468, 0.0051020407
    %v534 = vmul.f32 %v472, 0.0051020407
    %v535 = vmul.f32 %v476, 0.0051020407
    %v536 = vmul.f32 %v480, 0.0051020407
    %v537 = vmul.f32 %v484, 0.0051020407
    %v538 = vmul.f32 %v488, 0.0051020407
    %v539 = vmul.f32 %v492, 0.0051020407
    %v540 = vmul.f32 %v496, 0.0051020407
    %v541 = vmul.f32 %v500, 0.0051020407
    %v542 = vmul.f32 %v504, 0.0051020407
    %v543 = vmul.f32 %v508, 0.0051020407
    %v544 = vmul.f32 %v512, 0.0051020407
    %v545 = vmul.f32 %v289, %v289
    %v546 = vmul.f32 %v290, %v290
    %v547 = vmul.f32 %v291, %v291
    %v548 = vmul.f32 %v292, %v292
    %v549 = vmul.f32 %v293, %v293
    %v550 = vmul.f32 %v294, %v294
    %v551 = vmul.f32 %v295, %v295
    %v552 = vmul.f32 %v296, %v296
    %v553 = vmul.f32 %v297, %v297
    %v554 = vmul.f32 %v298, %v298
    %v555 = vmul.f32 %v299, %v299
    %v556 = vmul.f32 %v300, %v300
    %v557 = vmul.f32 %v301, %v301
    %v558 = vmul.f32 %v302, %v302
    %v559 = vmul.f32 %v303, %v303
    %v560 = vmul.f32 %v304, %v304
    %v561 = vmul.f32 %v305, %v305
    %v562 = vmul.f32 %v306, %v306
    %v563 = vmul.f32 %v307, %v307
    %v564 = vmul.f32 %v308, %v308
    %v565 = vmul.f32 %v309, %v309
    %v566 = vmul.f32 %v310, %v310
    %v567 = vmul.f32 %v311, %v311
    %v568 = vmul.f32 %v312, %v312
    %v569 = vmul.f32 %v313, %v313
    %v570 = vmul.f32 %v314, %v314
    %v571 = vmul.f32 %v315, %v315
    %v572 = vmul.f32 %v316, %v316
    %v573 = vmul.f32 %v317, %v317
    %v574 = vmul.f32 %v318, %v318
    %v575 = vmul.f32 %v319, %v319
    %v576 = vmul.f32 %v320, %v320
    %v577 = vsub.f32 %v513, %v545
    %v578 = vsub.f32 %v514, %v546
    %v579 = vsub.f32 %v515, %v547
    %v580 = vsub.f32 %v516, %v548
    %v581 = vsub.f32 %v517, %v549
    %v582 = vsub.f32 %v518, %v550
    %v583 = vsub.f32 %v519, %v551
    %v584 = vsub.f32 %v520, %v552
    %v585 = vsub.f32 %v521, %v553
    %v586 = vsub.f32 %v522, %v554
    %v587 = vsub.f32 %v523, %v555
    %v588 = vsub.f32 %v524, %v556
    %v589 = vsub.f32 %v525, %v557
    %v590 = vsub.f32 %v526, %v558
    %v591 = vsub.f32 %v527, %v559
    %v592 = vsub.f32 %v528, %v560
    %v593 = vsub.f32 %v529, %v561
    %v594 = vsub.f32 %v530, %v562
    %v595 = vsub.f32 %v531, %v563
    %v596 = vsub.f32 %v532, %v564
    %v597 = vsub.f32 %v533, %v565
    %v598 = vsub.f32 %v534, %v566
    %v599 = vsub.f32 %v535, %v567
    %v600 = vsub.f32 %v536, %v568
    %v601 = vsub.f32 %v537, %v569
    %v602 = vsub.f32 %v538, %v570
    %v603 = vsub.f32 %v539, %v571
    %v604 = vsub.f32 %v540, %v572
    %v605 = vsub.f32 %v541, %v573
    %v606 = vsub.f32 %v542, %v574
    %v607 = vsub.f32 %v543, %v575
    %v608 = vsub.f32 %v544, %v576
    %v609 = vadd.f32 %v577, 1e-05
    %v610 = vadd.f32 %v578, 1e-05
    %v611 = vadd.f32 %v579, 1e-05
    %v612 = vadd.f32 %v580, 1e-05
    %v613 = vadd.f32 %v581, 1e-05
    %v614 = vadd.f32 %v582, 1e-05
    %v615 = vadd.f32 %v583, 1e-05
    %v616 = vadd.f32 %v584, 1e-05
    %v617 = vadd.f32 %v585, 1e-05
    %v618 = vadd.f32 %v586, 1e-05
    %v619 = vadd.f32 %v587, 1e-05
    %v620 = vadd.f32 %v588, 1e-05
    %v621 = vadd.f32 %v589, 1e-05
    %v622 = vadd.f32 %v590, 1e-05
    %v623 = vadd.f32 %v591, 1e-05
    %v624 = vadd.f32 %v592, 1e-05
    %v625 = vadd.f32 %v593, 1e-05
    %v626 = vadd.f32 %v594, 1e-05
    %v627 = vadd.f32 %v595, 1e-05
    %v628 = vadd.f32 %v596, 1e-05
    %v629 = vadd.f32 %v597, 1e-05
    %v630 = vadd.f32 %v598, 1e-05
    %v631 = vadd.f32 %v599, 1e-05
    %v632 = vadd.f32 %v600, 1e-05
    %v633 = vadd.f32 %v601, 1e-05
    %v634 = vadd.f32 %v602, 1e-05
    %v635 = vadd.f32 %v603, 1e-05
    %v636 = vadd.f32 %v604, 1e-05
    %v637 = vadd.f32 %v605, 1e-05
    %v638 = vadd.f32 %v606, 1e-05
    %v639 = vadd.f32 %v607, 1e-05
    %v640 = vadd.f32 %v608, 1e-05
    %v641 = vrsqrt.pop %v609
    %v642 = vrsqrt.pop %v610
    %v643 = vrsqrt.pop %v611
    %v644 = vrsqrt.pop %v612
    %v645 = vrsqrt.pop %v613
    %v646 = vrsqrt.pop %v614
    %v647 = vrsqrt.pop %v615
    %v648 = vrsqrt.pop %v616
    %v649 = vrsqrt.pop %v617
    %v650 = vrsqrt.pop %v618
    %v651 = vrsqrt.pop %v619
    %v652 = vrsqrt.pop %v620
    %v653 = vrsqrt.pop %v621
    %v654 = vrsqrt.pop %v622
    %v655 = vrsqrt.pop %v623
    %v656 = vrsqrt.pop %v624
    %v657 = vrsqrt.pop %v625
    %v658 = vrsqrt.pop %v626
    %v659 = vrsqrt.pop %v627
    %v660 = vrsqrt.pop %v628
    %v661 = vrsqrt.pop %v629
    %v662 = vrsqrt.pop %v630
    %v663 = vrsqrt.pop %v631
    %v664 = vrsqrt.pop %v632
    %v665 = vrsqrt.pop %v633
    %v666 = vrsqrt.pop %v634
    %v667 = vrsqrt.pop %v635
    %v668 = vrsqrt.pop %v636
    %v669 = vrsqrt.pop %v637
    %v670 = vrsqrt.pop %v638
    %v671 = vrsqrt.pop %v639
    %v672 = vrsqrt.pop %v640
    %v673 = vmul.f32 %v96, %v641
    %v674 = vmul.f32 %v97, %v642
    %v675 = vmul.f32 %v98, %v643
    %v676 = vmul.f32 %v99, %v644
    %v677 = vmul.f32 %v100, %v645
    %v678 = vmul.f32 %v101, %v646
    %v679 = vmul.f32 %v102, %v647
    %v680 = vmul.f32 %v103, %v648
    %v681 = vmul.f32 %v104, %v649
    %v682 = vmul.f32 %v105, %v650
    %v683 = vmul.f32 %v106, %v651
    %v684 = vmul.f32 %v107, %v652
    %v685 = vmul.f32 %v108, %v653
    %v686 = vmul.f32 %v109, %v654
    %v687 = vmul.f32 %v110, %v655
    %v688 = vmul.f32 %v111, %v656
    %v689 = vmul.f32 %v112, %v657
    %v690 = vmul.f32 %v113, %v658
    %v691 = vmul.f32 %v114, %v659
    %v692 = vmul.f32 %v115, %v660
    %v693 = vmul.f32 %v116, %v661
    %v694 = vmul.f32 %v117, %v662
    %v695 = vmul.f32 %v118, %v663
    %v696 = vmul.f32 %v119, %v664
    %v697 = vmul.f32 %v120, %v665
    %v698 = vmul.f32 %v121, %v666
    %v699 = vmul.f32 %v122, %v667
    %v700 = vmul.f32 %v123, %v668
    %v701 = vmul.f32 %v124, %v669
    %v702 = vmul.f32 %v125, %v670
    %v703 = vmul.f32 %v126, %v671
    %v704 = vmul.f32 %v127, %v672
    %v705 = vmul.f32 %v289, %v673
    %v706 = vmul.f32 %v290, %v674
    %v707 = vmul.f32 %v291, %v675
    %v708 = vmul.f32 %v292, %v676
    %v709 = vmul.f32 %v293, %v677
    %v710 = vmul.f32 %v294, %v678
    %v711 = vmul.f32 %v295, %v679
    %v712 = vmul.f32 %v296, %v680
    %v713 = vmul.f32 %v297, %v681
    %v714 = vmul.f32 %v298, %v682
    %v715 = vmul.f32 %v299, %v683
    %v716 = vmul.f32 %v300, %v684
    %v717 = vmul.f32 %v301, %v685
    %v718 = vmul.f32 %v302, %v686
    %v719 = vmul.f32 %v303, %v687
    %v720 = vmul.f32 %v304, %v688
    %v721 = vmul.f32 %v305, %v689
    %v722 = vmul.f32 %v306, %v690
    %v723 = vmul.f32 %v307, %v691
    %v724 = vmul.f32 %v308, %v692
    %v725 = vmul.f32 %v309, %v693
    %v726 = vmul.f32 %v310, %v694
    %v727 = vmul.f32 %v311, %v695
    %v728 = vmul.f32 %v312, %v696
    %v729 = vmul.f32 %v313, %v697
    %v730 = vmul.f32 %v314, %v698
    %v731 = vmul.f32 %v315, %v699
    %v732 = vmul.f32 %v316, %v700
    %v733 = vmul.f32 %v317, %v701
    %v734 = vmul.f32 %v318, %v702
    %v735 = vmul.f32 %v319, %v703
    %v736 = vmul.f32 %v320, %v704
    %v737 = vsub.f32 %v128, %v705
    %v738 = vsub.f32 %v129, %v706
    %v739 = vsub.f32 %v130, %v707
    %v740 = vsub.f32 %v131, %v708
    %v741 = vsub.f32 %v132, %v709
    %v742 = vsub.f32 %v133, %v710
    %v743 = vsub.f32 %v134, %v711
    %v744 = vsub.f32 %v135, %v712
    %v745 = vsub.f32 %v136, %v713
    %v746 = vsub.f32 %v137, %v714
    %v747 = vsub.f32 %v138, %v715
    %v748 = vsub.f32 %v139, %v716
    %v749 = vsub.f32 %v140, %v717
    %v750 = vsub.f32 %v141, %v718
    %v751 = vsub.f32 %v142, %v719
    %v752 = vsub.f32 %v143, %v720
    %v753 = vsub.f32 %v144, %v721
    %v754 = vsub.f32 %v145, %v722
    %v755 = vsub.f32 %v146, %v723
    %v756 = vsub.f32 %v147, %v724
    %v757 = vsub.f32 %v148, %v725
    %v758 = vsub.f32 %v149, %v726
    %v759 = vsub.f32 %v150, %v727
    %v760 = vsub.f32 %v151, %v728
    %v761 = vsub.f32 %v152, %v729
    %v762 = vsub.f32 %v153, %v730
    %v763 = vsub.f32 %v154, %v731
    %v764 = vsub.f32 %v155, %v732
    %v765 = vsub.f32 %v156, %v733
    %v766 = vsub.f32 %v157, %v734
    %v767 = vsub.f32 %v158, %v735
    %v768 = vsub.f32 %v159, %v736
    %770 = vset.pattern.permute.xlu0 0
    %771 = vperm.xlu0 %770, %v673
    %v772 = vpop.permute.xlu0 %771
    %775 = vset.pattern.permute.xlu0 0
    %776 = vperm.xlu0 %775, %v674
    %v777 = vpop.permute.xlu0 %776
    %780 = vset.pattern.permute.xlu0 0
    %781 = vperm.xlu0 %780, %v675
    %v782 = vpop.permute.xlu0 %781
    %785 = vset.pattern.permute.xlu0 0
    %786 = vperm.xlu0 %785, %v676
    %v787 = vpop.permute.xlu0 %786
    %790 = vset.pattern.permute.xlu0 0
    %791 = vperm.xlu0 %790, %v677
    %v792 = vpop.permute.xlu0 %791
    %795 = vset.pattern.permute.xlu0 0
    %796 = vperm.xlu0 %795, %v678
    %v797 = vpop.permute.xlu0 %796
    %800 = vset.pattern.permute.xlu0 0
    %801 = vperm.xlu0 %800, %v679
    %v802 = vpop.permute.xlu0 %801
    %805 = vset.pattern.permute.xlu0 0
    %806 = vperm.xlu0 %805, %v680
    %v807 = vpop.permute.xlu0 %806
    %810 = vset.pattern.permute.xlu0 0
    %811 = vperm.xlu0 %810, %v681
    %v812 = vpop.permute.xlu0 %811
    %815 = vset.pattern.permute.xlu0 0
    %816 = vperm.xlu0 %815, %v682
    %v817 = vpop.permute.xlu0 %816
    %820 = vset.pattern.permute.xlu0 0
    %821 = vperm.xlu0 %820, %v683
    %v822 = vpop.permute.xlu0 %821
    %825 = vset.pattern.permute.xlu0 0
    %826 = vperm.xlu0 %825, %v684
    %v827 = vpop.permute.xlu0 %826
    %830 = vset.pattern.permute.xlu0 0
    %831 = vperm.xlu0 %830, %v685
    %v832 = vpop.permute.xlu0 %831
    %835 = vset.pattern.permute.xlu0 0
    %836 = vperm.xlu0 %835, %v686
    %v837 = vpop.permute.xlu0 %836
    %840 = vset.pattern.permute.xlu0 0
    %841 = vperm.xlu0 %840, %v687
    %v842 = vpop.permute.xlu0 %841
    %845 = vset.pattern.permute.xlu0 0
    %846 = vperm.xlu0 %845, %v688
    %v847 = vpop.permute.xlu0 %846
    %850 = vset.pattern.permute.xlu0 0
    %851 = vperm.xlu0 %850, %v689
    %v852 = vpop.permute.xlu0 %851
    %855 = vset.pattern.permute.xlu0 0
    %856 = vperm.xlu0 %855, %v690
    %v857 = vpop.permute.xlu0 %856
    %860 = vset.pattern.permute.xlu0 0
    %861 = vperm.xlu0 %860, %v691
    %v862 = vpop.permute.xlu0 %861
    %865 = vset.pattern.permute.xlu0 0
    %866 = vperm.xlu0 %865, %v692
    %v867 = vpop.permute.xlu0 %866
    %870 = vset.pattern.permute.xlu0 0
    %871 = vperm.xlu0 %870, %v693
    %v872 = vpop.permute.xlu0 %871
    %875 = vset.pattern.permute.xlu0 0
    %876 = vperm.xlu0 %875, %v694
    %v877 = vpop.permute.xlu0 %876
    %880 = vset.pattern.permute.xlu0 0
    %881 = vperm.xlu0 %880, %v695
    %v882 = vpop.permute.xlu0 %881
    %885 = vset.pattern.permute.xlu0 0
    %886 = vperm.xlu0 %885, %v696
    %v887 = vpop.permute.xlu0 %886
    %890 = vset.pattern.permute.xlu0 0
    %891 = vperm.xlu0 %890, %v697
    %v892 = vpop.permute.xlu0 %891
    %895 = vset.pattern.permute.xlu0 0
    %896 = vperm.xlu0 %895, %v698
    %v897 = vpop.permute.xlu0 %896
    %900 = vset.pattern.permute.xlu0 0
    %901 = vperm.xlu0 %900, %v699
    %v902 = vpop.permute.xlu0 %901
    %905 = vset.pattern.permute.xlu0 0
    %906 = vperm.xlu0 %905, %v700
    %v907 = vpop.permute.xlu0 %906
    %910 = vset.pattern.permute.xlu0 0
    %911 = vperm.xlu0 %910, %v701
    %v912 = vpop.permute.xlu0 %911
    %915 = vset.pattern.permute.xlu0 0
    %916 = vperm.xlu0 %915, %v702
    %v917 = vpop.permute.xlu0 %916
    %920 = vset.pattern.permute.xlu0 0
    %921 = vperm.xlu0 %920, %v703
    %v922 = vpop.permute.xlu0 %921
    %925 = vset.pattern.permute.xlu0 0
    %926 = vperm.xlu0 %925, %v704
    %v927 = vpop.permute.xlu0 %926
    %v929 = vmul.f32 %v24, %v772
    %v930 = vmul.f32 %v25, %v772
    %v931 = vmul.f32 %v26, %v777
    %v932 = vmul.f32 %v27, %v777
    %v933 = vmul.f32 %v28, %v782
    %v934 = vmul.f32 %v29, %v782
    %v935 = vmul.f32 %v30, %v787
    %v936 = vmul.f32 %v31, %v787
    %v937 = vmul.f32 %v32, %v792
    %v938 = vmul.f32 %v33, %v792
    %v939 = vmul.f32 %v34, %v797
    %v940 = vmul.f32 %v35, %v797
    %v941 = vmul.f32 %v36, %v802
    %v942 = vmul.f32 %v37, %v802
    %v943 = vmul.f32 %v38, %v807
    %v944 = vmul.f32 %v39, %v807
    %v945 = vmul.f32 %v40, %v812
    %v946 = vmul.f32 %v41, %v812
    %v947 = vmul.f32 %v42, %v817
    %v948 = vmul.f32 %v43, %v817
    %v949 = vmul.f32 %v44, %v822
    %v950 = vmul.f32 %v45, %v822
    %v951 = vmul.f32 %v46, %v827
    %v952 = vmul.f32 %v47, %v827
    %v953 = vmul.f32 %v48, %v832
    %v954 = vmul.f32 %v49, %v832
    %v955 = vmul.f32 %v50, %v837
    %v956 = vmul.f32 %v51, %v837
    %v957 = vmul.f32 %v52, %v842
    %v958 = vmul.f32 %v53, %v842
    %v959 = vmul.f32 %v54, %v847
    %v960 = vmul.f32 %v55, %v847
    %v961 = vmul.f32 %v56, %v852
    %v962 = vmul.f32 %v57, %v852
    %v963 = vmul.f32 %v58, %v857
    %v964 = vmul.f32 %v59, %v857
    %v965 = vmul.f32 %v60, %v862
    %v966 = vmul.f32 %v61, %v862
    %v967 = vmul.f32 %v62, %v867
    %v968 = vmul.f32 %v63, %v867
    %v969 = vmul.f32 %v64, %v872
    %v970 = vmul.f32 %v65, %v872
    %v971 = vmul.f32 %v66, %v877
    %v972 = vmul.f32 %v67, %v877
    %v973 = vmul.f32 %v68, %v882
    %v974 = vmul.f32 %v69, %v882
    %v975 = vmul.f32 %v70, %v887
    %v976 = vmul.f32 %v71, %v887
    %v977 = vmul.f32 %v72, %v892
    %v978 = vmul.f32 %v73, %v892
    %v979 = vmul.f32 %v74, %v897
    %v980 = vmul.f32 %v75, %v897
    %v981 = vmul.f32 %v76, %v902
    %v982 = vmul.f32 %v77, %v902
    %v983 = vmul.f32 %v78, %v907
    %v984 = vmul.f32 %v79, %v907
    %v985 = vmul.f32 %v80, %v912
    %v986 = vmul.f32 %v81, %v912
    %v987 = vmul.f32 %v82, %v917
    %v988 = vmul.f32 %v83, %v917
    %v989 = vmul.f32 %v84, %v922
    %v990 = vmul.f32 %v85, %v922
    %v991 = vmul.f32 %v86, %v927
    %v992 = vmul.f32 %v87, %v927
    %994 = vset.pattern.permute.xlu0 0
    %995 = vperm.xlu0 %994, %v737
    %v996 = vpop.permute.xlu0 %995
    %999 = vset.pattern.permute.xlu0 0
    %1000 = vperm.xlu0 %999, %v738
    %v1001 = vpop.permute.xlu0 %1000
    %1004 = vset.pattern.permute.xlu0 0
    %1005 = vperm.xlu0 %1004, %v739
    %v1006 = vpop.permute.xlu0 %1005
    %1009 = vset.pattern.permute.xlu0 0
    %1010 = vperm.xlu0 %1009, %v740
    %v1011 = vpop.permute.xlu0 %1010
    %1014 = vset.pattern.permute.xlu0 0
    %1015 = vperm.xlu0 %1014, %v741
    %v1016 = vpop.permute.xlu0 %1015
    %1019 = vset.pattern.permute.xlu0 0
    %1020 = vperm.xlu0 %1019, %v742
    %v1021 = vpop.permute.xlu0 %1020
    %1024 = vset.pattern.permute.xlu0 0
    %1025 = vperm.xlu0 %1024, %v743
    %v1026 = vpop.permute.xlu0 %1025
    %1029 = vset.pattern.permute.xlu0 0
    %1030 = vperm.xlu0 %1029, %v744
    %v1031 = vpop.permute.xlu0 %1030
    %1034 = vset.pattern.permute.xlu0 0
    %1035 = vperm.xlu0 %1034, %v745
    %v1036 = vpop.permute.xlu0 %1035
    %1039 = vset.pattern.permute.xlu0 0
    %1040 = vperm.xlu0 %1039, %v746
    %v1041 = vpop.permute.xlu0 %1040
    %1044 = vset.pattern.permute.xlu0 0
    %1045 = vperm.xlu0 %1044, %v747
    %v1046 = vpop.permute.xlu0 %1045
    %1049 = vset.pattern.permute.xlu0 0
    %1050 = vperm.xlu0 %1049, %v748
    %v1051 = vpop.permute.xlu0 %1050
    %1054 = vset.pattern.permute.xlu0 0
    %1055 = vperm.xlu0 %1054, %v749
    %v1056 = vpop.permute.xlu0 %1055
    %1059 = vset.pattern.permute.xlu0 0
    %1060 = vperm.xlu0 %1059, %v750
    %v1061 = vpop.permute.xlu0 %1060
    %1064 = vset.pattern.permute.xlu0 0
    %1065 = vperm.xlu0 %1064, %v751
    %v1066 = vpop.permute.xlu0 %1065
    %1069 = vset.pattern.permute.xlu0 0
    %1070 = vperm.xlu0 %1069, %v752
    %v1071 = vpop.permute.xlu0 %1070
    %1074 = vset.pattern.permute.xlu0 0
    %1075 = vperm.xlu0 %1074, %v753
    %v1076 = vpop.permute.xlu0 %1075
    %1079 = vset.pattern.permute.xlu0 0
    %1080 = vperm.xlu0 %1079, %v754
    %v1081 = vpop.permute.xlu0 %1080
    %1084 = vset.pattern.permute.xlu0 0
    %1085 = vperm.xlu0 %1084, %v755
    %v1086 = vpop.permute.xlu0 %1085
    %1089 = vset.pattern.permute.xlu0 0
    %1090 = vperm.xlu0 %1089, %v756
    %v1091 = vpop.permute.xlu0 %1090
    %1094 = vset.pattern.permute.xlu0 0
    %1095 = vperm.xlu0 %1094, %v757
    %v1096 = vpop.permute.xlu0 %1095
    %1099 = vset.pattern.permute.xlu0 0
    %1100 = vperm.xlu0 %1099, %v758
    %v1101 = vpop.permute.xlu0 %1100
    %1104 = vset.pattern.permute.xlu0 0
    %1105 = vperm.xlu0 %1104, %v759
    %v1106 = vpop.permute.xlu0 %1105
    %1109 = vset.pattern.permute.xlu0 0
    %1110 = vperm.xlu0 %1109, %v760
    %v1111 = vpop.permute.xlu0 %1110
    %1114 = vset.pattern.permute.xlu0 0
    %1115 = vperm.xlu0 %1114, %v761
    %v1116 = vpop.permute.xlu0 %1115
    %1119 = vset.pattern.permute.xlu0 0
    %1120 = vperm.xlu0 %1119, %v762
    %v1121 = vpop.permute.xlu0 %1120
    %1124 = vset.pattern.permute.xlu0 0
    %1125 = vperm.xlu0 %1124, %v763
    %v1126 = vpop.permute.xlu0 %1125
    %1129 = vset.pattern.permute.xlu0 0
    %1130 = vperm.xlu0 %1129, %v764
    %v1131 = vpop.permute.xlu0 %1130
    %1134 = vset.pattern.permute.xlu0 0
    %1135 = vperm.xlu0 %1134, %v765
    %v1136 = vpop.permute.xlu0 %1135
    %1139 = vset.pattern.permute.xlu0 0
    %1140 = vperm.xlu0 %1139, %v766
    %v1141 = vpop.permute.xlu0 %1140
    %1144 = vset.pattern.permute.xlu0 0
    %1145 = vperm.xlu0 %1144, %v767
    %v1146 = vpop.permute.xlu0 %1145
    %1149 = vset.pattern.permute.xlu0 0
    %1150 = vperm.xlu0 %1149, %v768
    %v1151 = vpop.permute.xlu0 %1150
    %v1153 = vadd.f32 %v929, %v996
    %v1154 = vadd.f32 %v930, %v996
    %v1155 = vadd.f32 %v931, %v1001
    %v1156 = vadd.f32 %v932, %v1001
    %v1157 = vadd.f32 %v933, %v1006
    %v1158 = vadd.f32 %v934, %v1006
    %v1159 = vadd.f32 %v935, %v1011
    %v1160 = vadd.f32 %v936, %v1011
    %v1161 = vadd.f32 %v937, %v1016
    %v1162 = vadd.f32 %v938, %v1016
    %v1163 = vadd.f32 %v939, %v1021
    %v1164 = vadd.f32 %v940, %v1021
    %v1165 = vadd.f32 %v941, %v1026
    %v1166 = vadd.f32 %v942, %v1026
    %v1167 = vadd.f32 %v943, %v1031
    %v1168 = vadd.f32 %v944, %v1031
    %v1169 = vadd.f32 %v945, %v1036
    %v1170 = vadd.f32 %v946, %v1036
    %v1171 = vadd.f32 %v947, %v1041
    %v1172 = vadd.f32 %v948, %v1041
    %v1173 = vadd.f32 %v949, %v1046
    %v1174 = vadd.f32 %v950, %v1046
    %v1175 = vadd.f32 %v951, %v1051
    %v1176 = vadd.f32 %v952, %v1051
    %v1177 = vadd.f32 %v953, %v1056
    %v1178 = vadd.f32 %v954, %v1056
    %v1179 = vadd.f32 %v955, %v1061
    %v1180 = vadd.f32 %v956, %v1061
    %v1181 = vadd.f32 %v957, %v1066
    %v1182 = vadd.f32 %v958, %v1066
    %v1183 = vadd.f32 %v959, %v1071
    %v1184 = vadd.f32 %v960, %v1071
    %v1185 = vadd.f32 %v961, %v1076
    %v1186 = vadd.f32 %v962, %v1076
    %v1187 = vadd.f32 %v963, %v1081
    %v1188 = vadd.f32 %v964, %v1081
    %v1189 = vadd.f32 %v965, %v1086
    %v1190 = vadd.f32 %v966, %v1086
    %v1191 = vadd.f32 %v967, %v1091
    %v1192 = vadd.f32 %v968, %v1091
    %v1193 = vadd.f32 %v969, %v1096
    %v1194 = vadd.f32 %v970, %v1096
    %v1195 = vadd.f32 %v971, %v1101
    %v1196 = vadd.f32 %v972, %v1101
    %v1197 = vadd.f32 %v973, %v1106
    %v1198 = vadd.f32 %v974, %v1106
    %v1199 = vadd.f32 %v975, %v1111
    %v1200 = vadd.f32 %v976, %v1111
    %v1201 = vadd.f32 %v977, %v1116
    %v1202 = vadd.f32 %v978, %v1116
    %v1203 = vadd.f32 %v979, %v1121
    %v1204 = vadd.f32 %v980, %v1121
    %v1205 = vadd.f32 %v981, %v1126
    %v1206 = vadd.f32 %v982, %v1126
    %v1207 = vadd.f32 %v983, %v1131
    %v1208 = vadd.f32 %v984, %v1131
    %v1209 = vadd.f32 %v985, %v1136
    %v1210 = vadd.f32 %v986, %v1136
    %v1211 = vadd.f32 %v987, %v1141
    %v1212 = vadd.f32 %v988, %v1141
    %v1213 = vadd.f32 %v989, %v1146
    %v1214 = vadd.f32 %v990, %v1146
    %v1215 = vadd.f32 %v991, %v1151
    %v1216 = vadd.f32 %v992, %v1151
    %1217 = vst [vmem:[#allocation2] sm:$0xff] %v1153
    %1218 = vst.msk [vmem:[#allocation2 + $0x8] sm:$0xff] %vm160, %v1154
    %1219 = vst [vmem:[#allocation2 + $0x10] sm:$0xff] %v1155
    %1220 = vst.msk [vmem:[#allocation2 + $0x18] sm:$0xff] %vm160, %v1156
    %1221 = vst [vmem:[#allocation2 + $0x20] sm:$0xff] %v1157
    %1222 = vst.msk [vmem:[#allocation2 + $0x28] sm:$0xff] %vm160, %v1158
    %1223 = vst [vmem:[#allocation2 + $0x30] sm:$0xff] %v1159
    %1224 = vst.msk [vmem:[#allocation2 + $0x38] sm:$0xff] %vm160, %v1160
    %1225 = vst [vmem:[#allocation2 + $0x40] sm:$0xff] %v1161
    %1226 = vst.msk [vmem:[#allocation2 + $0x48] sm:$0xff] %vm160, %v1162
    %1227 = vst [vmem:[#allocation2 + $0x50] sm:$0xff] %v1163
    %1228 = vst.msk [vmem:[#allocation2 + $0x58] sm:$0xff] %vm160, %v1164
    %1229 = vst [vmem:[#allocation2 + $0x60] sm:$0xff] %v1165
    %1230 = vst.msk [vmem:[#allocation2 + $0x68] sm:$0xff] %vm160, %v1166
    %1231 = vst [vmem:[#allocation2 + $0x70] sm:$0xff] %v1167
    %1232 = vst.msk [vmem:[#allocation2 + $0x78] sm:$0xff] %vm160, %v1168
    %1233 = vst [vmem:[#allocation2 + $0x80] sm:$0xff] %v1169
    %1234 = vst.msk [vmem:[#allocation2 + $0x88] sm:$0xff] %vm160, %v1170
    %1235 = vst [vmem:[#allocation2 + $0x90] sm:$0xff] %v1171
    %1236 = vst.msk [vmem:[#allocation2 + $0x98] sm:$0xff] %vm160, %v1172
    %1237 = vst [vmem:[#allocation2 + $0xa0] sm:$0xff] %v1173
    %1238 = vst.msk [vmem:[#allocation2 + $0xa8] sm:$0xff] %vm160, %v1174
    %1239 = vst [vmem:[#allocation2 + $0xb0] sm:$0xff] %v1175
    %1240 = vst.msk [vmem:[#allocation2 + $0xb8] sm:$0xff] %vm160, %v1176
    %1241 = vst [vmem:[#allocation2 + $0xc0] sm:$0xff] %v1177
    %1242 = vst.msk [vmem:[#allocation2 + $0xc8] sm:$0xff] %vm160, %v1178
    %1243 = vst [vmem:[#allocation2 + $0xd0] sm:$0xff] %v1179
    %1244 = vst.msk [vmem:[#allocation2 + $0xd8] sm:$0xff] %vm160, %v1180
    %1245 = vst [vmem:[#allocation2 + $0xe0] sm:$0xff] %v1181
    %1246 = vst.msk [vmem:[#allocation2 + $0xe8] sm:$0xff] %vm160, %v1182
    %1247 = vst [vmem:[#allocation2 + $0xf0] sm:$0xff] %v1183
    %1248 = vst.msk [vmem:[#allocation2 + $0xf8] sm:$0xff] %vm160, %v1184
    %1249 = vst [vmem:[#allocation2 + $0x100] sm:$0xff] %v1185
    %1250 = vst.msk [vmem:[#allocation2 + $0x108] sm:$0xff] %vm160, %v1186
    %1251 = vst [vmem:[#allocation2 + $0x110] sm:$0xff] %v1187
    %1252 = vst.msk [vmem:[#allocation2 + $0x118] sm:$0xff] %vm160, %v1188
    %1253 = vst [vmem:[#allocation2 + $0x120] sm:$0xff] %v1189
    %1254 = vst.msk [vmem:[#allocation2 + $0x128] sm:$0xff] %vm160, %v1190
    %1255 = vst [vmem:[#allocation2 + $0x130] sm:$0xff] %v1191
    %1256 = vst.msk [vmem:[#allocation2 + $0x138] sm:$0xff] %vm160, %v1192
    %1257 = vst [vmem:[#allocation2 + $0x140] sm:$0xff] %v1193
    %1258 = vst.msk [vmem:[#allocation2 + $0x148] sm:$0xff] %vm160, %v1194
    %1259 = vst [vmem:[#allocation2 + $0x150] sm:$0xff] %v1195
    %1260 = vst.msk [vmem:[#allocation2 + $0x158] sm:$0xff] %vm160, %v1196
    %1261 = vst [vmem:[#allocation2 + $0x160] sm:$0xff] %v1197
    %1262 = vst.msk [vmem:[#allocation2 + $0x168] sm:$0xff] %vm160, %v1198
    %1263 = vst [vmem:[#allocation2 + $0x170] sm:$0xff] %v1199
    %1264 = vst.msk [vmem:[#allocation2 + $0x178] sm:$0xff] %vm160, %v1200
    %1265 = vst [vmem:[#allocation2 + $0x180] sm:$0xff] %v1201
    %1266 = vst.msk [vmem:[#allocation2 + $0x188] sm:$0xff] %vm160, %v1202
    %1267 = vst [vmem:[#allocation2 + $0x190] sm:$0xff] %v1203
    %1268 = vst.msk [vmem:[#allocation2 + $0x198] sm:$0xff] %vm160, %v1204
    %1269 = vst [vmem:[#allocation2 + $0x1a0] sm:$0xff] %v1205
    %1270 = vst.msk [vmem:[#allocation2 + $0x1a8] sm:$0xff] %vm160, %v1206
    %1271 = vst [vmem:[#allocation2 + $0x1b0] sm:$0xff] %v1207
    %1272 = vst.msk [vmem:[#allocation2 + $0x1b8] sm:$0xff] %vm160, %v1208
    %1273 = vst [vmem:[#allocation2 + $0x1c0] sm:$0xff] %v1209
    %1274 = vst.msk [vmem:[#allocation2 + $0x1c8] sm:$0xff] %vm160, %v1210
    %1275 = vst [vmem:[#allocation2 + $0x1d0] sm:$0xff] %v1211
    %1276 = vst.msk [vmem:[#allocation2 + $0x1d8] sm:$0xff] %vm160, %v1212
    %1277 = vst [vmem:[#allocation2 + $0x1e0] sm:$0xff] %v1213
    %1278 = vst.msk [vmem:[#allocation2 + $0x1e8] sm:$0xff] %vm160, %v1214
    %1279 = vst [vmem:[#allocation2 + $0x1f0] sm:$0xff] %v1215
    %1280 = vst.msk [vmem:[#allocation2 + $0x1f8] sm:$0xff] %vm160, %v1216
    %v1281 = vld [vmem:[%s4] sm:$0xff]
    %v1282 = vld [vmem:[%s4 + $0x8] sm:$0xff]
    %v1283 = vld [vmem:[%s4 + $0x10] sm:$0xff]
    %v1284 = vld [vmem:[%s4 + $0x18] sm:$0xff]
    %v1285 = vld [vmem:[%s5] sm:$0xff]
    %v1286 = vld [vmem:[%s5 + $0x8] sm:$0xff]
    %v1287 = vld [vmem:[%s5 + $0x10] sm:$0xff]
    %v1288 = vld [vmem:[%s5 + $0x18] sm:$0xff]
    %v1289 = vsel %vm160, %v89, 0.0
    %v1290 = vadd.f32 %v88, %v1289
    %1291 = vadd.xlane.f32.xlu0 %v1290
    %v1292 = vpop.xlane.xlu0 %1291
    %v1293 = vsel %vm160, %v91, 0.0
    %v1294 = vadd.f32 %v90, %v1293
    %1295 = vadd.xlane.f32.xlu0 %v1294
    %v1296 = vpop.xlane.xlu0 %1295
    %v1297 = vsel %vm160, %v93, 0.0
    %v1298 = vadd.f32 %v92, %v1297
    %1299 = vadd.xlane.f32.xlu0 %v1298
    %v1300 = vpop.xlane.xlu0 %1299
    %v1301 = vsel %vm160, %v95, 0.0
    %v1302 = vadd.f32 %v94, %v1301
    %1303 = vadd.xlane.f32.xlu0 %v1302
    %v1304 = vpop.xlane.xlu0 %1303
    %v1305 = vmul.f32 %v1292, 0.0051020407
    %v1306 = vmul.f32 %v1296, 0.0051020407
    %v1307 = vmul.f32 %v1300, 0.0051020407
    %v1308 = vmul.f32 %v1304, 0.0051020407
    %v1309 = vmul.f32 %v88, %v88
    %v1310 = vmul.f32 %v89, %v89
    %v1311 = vmul.f32 %v90, %v90
    %v1312 = vmul.f32 %v91, %v91
    %v1313 = vmul.f32 %v92, %v92
    %v1314 = vmul.f32 %v93, %v93
    %v1315 = vmul.f32 %v94, %v94
    %v1316 = vmul.f32 %v95, %v95
    %v1317 = vsel %vm160, %v1310, 0.0
    %v1318 = vadd.f32 %v1309, %v1317
    %1319 = vadd.xlane.f32.xlu0 %v1318
    %v1320 = vpop.xlane.xlu0 %1319
    %v1321 = vsel %vm160, %v1312, 0.0
    %v1322 = vadd.f32 %v1311, %v1321
    %1323 = vadd.xlane.f32.xlu0 %v1322
    %v1324 = vpop.xlane.xlu0 %1323
    %v1325 = vsel %vm160, %v1314, 0.0
    %v1326 = vadd.f32 %v1313, %v1325
    %1327 = vadd.xlane.f32.xlu0 %v1326
    %v1328 = vpop.xlane.xlu0 %1327
    %v1329 = vsel %vm160, %v1316, 0.0
    %v1330 = vadd.f32 %v1315, %v1329
    %1331 = vadd.xlane.f32.xlu0 %v1330
    %v1332 = vpop.xlane.xlu0 %1331
    %v1333 = vmul.f32 %v1320, 0.0051020407
    %v1334 = vmul.f32 %v1324, 0.0051020407
    %v1335 = vmul.f32 %v1328, 0.0051020407
    %v1336 = vmul.f32 %v1332, 0.0051020407
    %v1337 = vmul.f32 %v1305, %v1305
    %v1338 = vmul.f32 %v1306, %v1306
    %v1339 = vmul.f32 %v1307, %v1307
    %v1340 = vmul.f32 %v1308, %v1308
    %v1341 = vsub.f32 %v1333, %v1337
    %v1342 = vsub.f32 %v1334, %v1338
    %v1343 = vsub.f32 %v1335, %v1339
    %v1344 = vsub.f32 %v1336, %v1340
    %v1345 = vadd.f32 %v1341, 1e-05
    %v1346 = vadd.f32 %v1342, 1e-05
    %v1347 = vadd.f32 %v1343, 1e-05
    %v1348 = vadd.f32 %v1344, 1e-05
    %v1349 = vrsqrt.pop %v1345
    %v1350 = vrsqrt.pop %v1346
    %v1351 = vrsqrt.pop %v1347
    %v1352 = vrsqrt.pop %v1348
    %v1353 = vmul.f32 %v1281, %v1349
    %v1354 = vmul.f32 %v1282, %v1350
    %v1355 = vmul.f32 %v1283, %v1351
    %v1356 = vmul.f32 %v1284, %v1352
    %v1357 = vmul.f32 %v1305, %v1353
    %v1358 = vmul.f32 %v1306, %v1354
    %v1359 = vmul.f32 %v1307, %v1355
    %v1360 = vmul.f32 %v1308, %v1356
    %v1361 = vsub.f32 %v1285, %v1357
    %v1362 = vsub.f32 %v1286, %v1358
    %v1363 = vsub.f32 %v1287, %v1359
    %v1364 = vsub.f32 %v1288, %v1360
    %1366 = vset.pattern.permute.xlu0 0
    %1367 = vperm.xlu0 %1366, %v1353
    %v1368 = vpop.permute.xlu0 %1367
    %1371 = vset.pattern.permute.xlu0 0
    %1372 = vperm.xlu0 %1371, %v1354
    %v1373 = vpop.permute.xlu0 %1372
    %1376 = vset.pattern.permute.xlu0 0
    %1377 = vperm.xlu0 %1376, %v1355
    %v1378 = vpop.permute.xlu0 %1377
    %1381 = vset.pattern.permute.xlu0 0
    %1382 = vperm.xlu0 %1381, %v1356
    %v1383 = vpop.permute.xlu0 %1382
    %v1385 = vmul.f32 %v88, %v1368
    %v1386 = vmul.f32 %v89, %v1368
    %v1387 = vmul.f32 %v90, %v1373
    %v1388 = vmul.f32 %v91, %v1373
    %v1389 = vmul.f32 %v92, %v1378
    %v1390 = vmul.f32 %v93, %v1378
    %v1391 = vmul.f32 %v94, %v1383
    %v1392 = vmul.f32 %v95, %v1383
    %1394 = vset.pattern.permute.xlu0 0
    %1395 = vperm.xlu0 %1394, %v1361
    %v1396 = vpop.permute.xlu0 %1395
    %1399 = vset.pattern.permute.xlu0 0
    %1400 = vperm.xlu0 %1399, %v1362
    %v1401 = vpop.permute.xlu0 %1400
    %1404 = vset.pattern.permute.xlu0 0
    %1405 = vperm.xlu0 %1404, %v1363
    %v1406 = vpop.permute.xlu0 %1405
    %1409 = vset.pattern.permute.xlu0 0
    %1410 = vperm.xlu0 %1409, %v1364
    %v1411 = vpop.permute.xlu0 %1410
    %v1413 = vadd.f32 %v1385, %v1396
    %v1414 = vadd.f32 %v1386, %v1396
    %v1415 = vadd.f32 %v1387, %v1401
    %v1416 = vadd.f32 %v1388, %v1401
    %v1417 = vadd.f32 %v1389, %v1406
    %v1418 = vadd.f32 %v1390, %v1406
    %v1419 = vadd.f32 %v1391, %v1411
    %v1420 = vadd.f32 %v1392, %v1411
    %1421 = vst [vmem:[#allocation2 + $0x200] sm:$0xff] %v1413
    %1422 = vst.msk [vmem:[#allocation2 + $0x208] sm:$0xff] %vm160, %v1414
    %1423 = vst [vmem:[#allocation2 + $0x210] sm:$0xff] %v1415
    %1424 = vst.msk [vmem:[#allocation2 + $0x218] sm:$0xff] %vm160, %v1416
    %1425 = vst [vmem:[#allocation2 + $0x220] sm:$0xff] %v1417
    %1426 = vst.msk [vmem:[#allocation2 + $0x228] sm:$0xff] %vm160, %v1418
    %1427 = vst [vmem:[#allocation2 + $0x230] sm:$0xff] %v1419
    %1428 = vst.msk [vmem:[#allocation2 + $0x238] sm:$0xff] %vm160, %v1420
    // Predicated region
    $region26: #{tpu_custom_call.1} parent=1 // pred_check
      _
    $region27: #{tpu_custom_call.1} parent=1 // pred_check_branch
      %1430 = sbr.rel (0) target = $region29
    $region28: #{tpu_custom_call.1} parent=1 // pred_region
      %s1432 = ssub.s32 9216, 9216
      %1433 = vsyncadd [#allocation3], %s1432
      %s1434 = sshll.u32 [#allocation2], 4
      %s1435 = int_to_ptr.vmem [resolvable:$true] %s1434
      %1440 = dma.vmem_to_hbm [thread:$0]  %s1435, 9216, %s6, [#allocation3], 256, 256, 16
    $region29: #{tpu_custom_call.1} parent=1 // pred_fallthru
      _
    // Predicated region
    $region30: #{tpu_custom_call.1} parent=1 // pred_check
      _
    $region31: #{tpu_custom_call.1} parent=1 // pred_check_branch
      %1442 = sbr.rel (0) target = $region33
    $region32: #{tpu_custom_call.1} parent=1 // pred_region
      %1443 = dma.done [#allocation3], 9216
    $region33: #{tpu_custom_call.1} parent=1 // pred_fallthru
      _
    %1444 = vsyncpa [#allocation3], 1

</llo_original>
